<compile_context>
chip_gen: v7x
topology: tpu7x:2x2x1
jax: 0.10.0
libtpu: 0.0.40
codegen_flags: <defaults>
</compile_context>

<pallas_src>
import functools

import jax
import jax.numpy as jnp
from jax.experimental import pallas as pl
from jax.experimental.pallas import tpu as pltpu


def linear_softmax_kernel(x_ref, wt_ref, b_ref, o_ref):
    # x_ref:  [tB, D]  bf16 batch tile
    # wt_ref: [D,  Cp] bf16 pre-transposed weight (VMEM-resident, single-buffered)
    # b_ref:  [1,  Cp] f32 bias, padded classes filled with -1e30
    # o_ref:  [tB, Cp] f32 lane-dense output tile
    logits = jnp.dot(x_ref[...], wt_ref[...],
                     preferred_element_type=jnp.float32) + b_ref[...]
    # numerically-stable softmax over the class axis (dim=1); padded classes -> exp 0
    m = jnp.max(logits, axis=-1, keepdims=True)
    e = jnp.exp(logits - m)
    denom = jnp.sum(e, axis=-1, keepdims=True)
    # exact divide (approx reciprocal is only ~2^-8..2^-12 accurate -> rows wouldn't sum to 1)
    o_ref[...] = (e / denom).astype(o_ref.dtype)


def _round_up(a, m):
    return ((a + m - 1) // m) * m


def prepare_params(w, b):
    """One-time layout work (hoisted out of the forward pass).

    w: [C, D] PyTorch nn.Linear weight, b: [C] bias.
    Returns (wt [D, Cp] bf16, b_pad [1, Cp] f32).
    """
    C, D = w.shape
    # Lane-dense class padding.  Use 256 granularity once the matmul N dim is big
    # enough to matter, to fill the 256-wide MXU on v6e/v7x (128 is full width on v5e).
    quantum = 256 if C > 200 else 128
    Cp = _round_up(max(C, 128), quantum)
    wt = jnp.zeros((D, Cp), jnp.bfloat16).at[:, :C].set(w.T.astype(jnp.bfloat16))
    b_pad = jnp.full((1, Cp), -1e30, jnp.float32).at[0, :C].set(b.astype(jnp.float32))
    return wt, b_pad


def _pick_batch_tile(B, D, Cp, vmem_budget_bytes):
    """Largest 8-aligned batch tile (<=512) that keeps the pipeline under the VMEM budget."""
    # Bytes per pipelined batch row: double-buffered bf16 x tile + double-buffered f32 out tile.
    per_row = 2 * (D * 2) + 2 * (Cp * 4)
    resident = D * Cp * 2 + Cp * 4  # single-buffered weight (bf16) + bias (f32)
    cap = max(8, ((vmem_budget_bytes - resident) // per_row // 8) * 8)
    tB = min(512, cap)
    if B <= tB:
        if B >= 32:
            # Split into >=2 tiles so the "parallel" batch axis can feed both v7x TensorCores.
            return min(tB, _round_up(pl.cdiv(B, 2), 8))
        return B  # single full-batch block (block dim == array dim, any B is legal)
    return tB


@functools.partial(jax.jit, static_argnames=("num_classes",))
def torch_model_forward(x, wt, b_pad, *, num_classes):
    """x: [B, D] f32, wt/b_pad from prepare_params.  Returns softmax(x @ W.T + b, axis=1)."""
    B, D = x.shape
    Cp = wt.shape[1]

    # bf16 MXU inputs (ideally the caller already holds bf16 activations); softmax stays f32.
    x_bf = x.astype(jnp.bfloat16)

    # Conservative budget (<< v7x's 64 MiB physical / 32 MiB scoped default).
    tB = _pick_batch_tile(B, D, Cp, vmem_budget_bytes=24 * 1024 * 1024)
    grid = (pl.cdiv(B, tB),)  # partial last block is masked -> no x zero-pad copy

    out_padded = pl.pallas_call(
        linear_softmax_kernel,
        out_shape=jax.ShapeDtypeStruct((B, Cp), jnp.float32),
        grid=grid,
        in_specs=[
            pl.BlockSpec((tB, D), lambda i: (i, 0)),        # x streams over the batch
            pl.BlockSpec((D, Cp), lambda i: (0, 0),         # weight: VMEM-resident,
                         pipeline_mode=pl.Buffered(1)),     #   single buffer (constant index_map)
            pl.BlockSpec((1, Cp), lambda i: (0, 0),         # bias: VMEM-resident, single buffer
                         pipeline_mode=pl.Buffered(1)),
        ],
        out_specs=pl.BlockSpec((tB, Cp), lambda i: (i, 0)),
        compiler_params=pltpu.CompilerParams(
            dimension_semantics=("parallel",),
            vmem_limit_bytes=32 * 1024 * 1024,
        ),
    )(x_bf, wt, b_pad)

    return out_padded[:, :num_classes]


if __name__ == "__main__":
    # Small shapes implied by the module: x [batch, input_size], Linear(input_size, num_classes)
    batch, input_size, num_classes = 8, 32, 5

    key = jax.random.PRNGKey(0)
    kx, kw, kb = jax.random.split(key, 3)

    x = jax.random.normal(kx, (batch, input_size), dtype=jnp.float32)
    # Deterministic "Linear" parameter init (uniform in +-1/sqrt(input_size), like PyTorch default)
    bound = 1.0 / (input_size ** 0.5)
    w = jax.random.uniform(kw, (num_classes, input_size), minval=-bound, maxval=bound,
                           dtype=jnp.float32)
    b = jax.random.uniform(kb, (num_classes,), minval=-bound, maxval=bound,
                           dtype=jnp.float32)

    wt, b_pad = prepare_params(w, b)  # one-time layout work, hoisted out of forward
    out = torch_model_forward(x, wt, b_pad, num_classes=num_classes)
    out = jax.block_until_ready(out)

    assert out.shape == (batch, num_classes)

    # Exact normalization -> rows sum to 1 up to f32 rounding.
    assert jnp.allclose(jnp.sum(out, axis=1), 1.0, atol=1e-4)

    # Reference mirroring the kernel's data path (bf16 matmul inputs, f32 accumulate/softmax).
    ref_bf16 = jax.nn.softmax(
        jnp.dot(x.astype(jnp.bfloat16), w.T.astype(jnp.bfloat16),
                preferred_element_type=jnp.float32) + b, axis=1)
    assert jnp.allclose(out, ref_bf16, rtol=2e-3, atol=2e-3)

    # Sanity vs the pure-f32 PyTorch semantics (difference = bf16 matmul rounding only).
    ref_f32 = jax.nn.softmax(x @ w.T + b, axis=1)
    assert jnp.allclose(out, ref_f32, rtol=1e-2, atol=1e-2)

    print("KERNEL_OK")
</pallas_src>

<mosaic_0001>
module attributes {stable_mosaic.version = 11 : i64} {
  func.func @linear_softmax_kernel(%arg0: i32, %arg1: memref<8x32xbf16, #tpu.memory_space<vmem>>, %arg2: memref<32x128xbf16, #tpu.memory_space<vmem>>, %arg3: memref<1x128xf32, #tpu.memory_space<vmem>>, %arg4: memref<8x128xf32, #tpu.memory_space<vmem>>) attributes {dimension_semantics = [#tpu.dimension_semantics<parallel>], iteration_bounds = array<i64: 1>, scalar_prefetch = 0 : i64, scratch_operands = 0 : i64, tpu.core_type = #tpu.core_type<tc>, window_params = [{transform_indices = @transform_0, window_bounds = array<i64: 8, 32>}, {pipeline_mode = #tpu.pipeline_mode<synchronous>, transform_indices = @transform_1, window_bounds = array<i64: 32, 128>}, {pipeline_mode = #tpu.pipeline_mode<synchronous>, transform_indices = @transform_2, window_bounds = array<i64: 1, 128>}, {transform_indices = @transform_3, window_bounds = array<i64: 8, 128>}]} {
    %c0 = arith.constant 0 : index
    %c0_0 = arith.constant 0 : index
    %0 = vector.load %arg1[%c0, %c0_0] : memref<8x32xbf16, #tpu.memory_space<vmem>>, vector<8x32xbf16>
    %c0_1 = arith.constant 0 : index
    %c0_2 = arith.constant 0 : index
    %1 = vector.load %arg2[%c0_1, %c0_2] : memref<32x128xbf16, #tpu.memory_space<vmem>>, vector<32x128xbf16>
    %cst = arith.constant dense<0.000000e+00> : vector<8x128xf32>
    %2 = tpu.matmul %0, %1, %cst {dimension_numbers = #tpu.dot_dimension_numbers<[1], [0], [0], [1], [0, 0, 1, 1], [], []>} : vector<8x32xbf16>, vector<32x128xbf16>, vector<8x128xf32> -> vector<8x128xf32>
    %c0_3 = arith.constant 0 : index
    %c0_4 = arith.constant 0 : index
    %3 = vector.load %arg3[%c0_3, %c0_4] : memref<1x128xf32, #tpu.memory_space<vmem>>, vector<1x128xf32>
    %4 = vector.broadcast %3 : vector<1x128xf32> to vector<8x128xf32>
    %5 = arith.addf %2, %4 : vector<8x128xf32>
    %cst_5 = arith.constant dense<0xFF800000> : vector<8xf32>
    %6 = vector.multi_reduction <maximumf>, %5, %cst_5 [1] : vector<8x128xf32> to vector<8xf32>
    %7 = vector.shape_cast %6 : vector<8xf32> to vector<8x1xf32>
    %8 = vector.broadcast %7 : vector<8x1xf32> to vector<8x128xf32>
    %9 = arith.subf %5, %8 : vector<8x128xf32>
    %10 = math.exp %9 : vector<8x128xf32>
    %cst_6 = arith.constant dense<0.000000e+00> : vector<8xf32>
    %11 = vector.multi_reduction <add>, %10, %cst_6 [1] : vector<8x128xf32> to vector<8xf32>
    %12 = vector.shape_cast %11 : vector<8xf32> to vector<8x1xf32>
    %13 = vector.broadcast %12 : vector<8x1xf32> to vector<8x128xf32>
    %14 = arith.divf %10, %13 : vector<8x128xf32>
    %c0_7 = arith.constant 0 : index
    %c0_8 = arith.constant 0 : index
    %15 = vector.load %arg4[%c0_7, %c0_8] : memref<8x128xf32, #tpu.memory_space<vmem>>, vector<8x128xf32>
    tpu.vector_store %arg4[%c0_7, %c0_8], %14 {strides = array<i32>} : memref<8x128xf32, #tpu.memory_space<vmem>>, vector<8x128xf32>,
    return
  }
  func.func @transform_0(%arg0: i32) -> (i32, i32) {
    %c0_i32 = arith.constant 0 : i32
    %c0_i32_0 = arith.constant 0 : i32
    return %arg0, %c0_i32 : i32, i32
  }
  func.func @transform_1(%arg0: i32) -> (i32, i32) {
    %c0_i32 = arith.constant 0 : i32
    %c0_i32_0 = arith.constant 0 : i32
    %c0_i32_1 = arith.constant 0 : i32
    return %c0_i32, %c0_i32_0 : i32, i32
  }
  func.func @transform_2(%arg0: i32) -> (i32, i32) {
    %c0_i32 = arith.constant 0 : i32
    %c0_i32_0 = arith.constant 0 : i32
    %c0_i32_1 = arith.constant 0 : i32
    return %c0_i32, %c0_i32_0 : i32, i32
  }
  func.func @transform_3(%arg0: i32) -> (i32, i32) {
    %c0_i32 = arith.constant 0 : i32
    %c0_i32_0 = arith.constant 0 : i32
    return %arg0, %c0_i32 : i32, i32
  }
}

</mosaic_0001>

<llo_original>
// kernel: torch_model_forward.1
$region0: #{torch_model_forward.1}
  #allocation0 [shape = 'u32[]', space=smem, size = 0x4, offset = 0x4, fixed_abs, tag = 'smem constant byte address 0x4 - core index']
  #allocation1 [shape = 'u32[144,128]{1,0:T(1,128)}', space=vmem, size = 0x12000, scoped, tag = 'internal scratch']
  %s0 = inlined_call_operand.vmem [shape: bf16[8,32], index: 0, kind: input, shape index: {}]
  %s1 = inlined_call_operand.hbm [shape: bf16[32,128], index: 1, kind: input, shape index: {}]
  %s2 = inlined_call_operand.vmem [shape: f32[1,128], index: 2, kind: input, shape index: {}]
  %s3 = inlined_call_operand.hbm [shape: f32[8,128], index: 3, kind: output, shape index: {}]
  %s4 = sld [smem:[#allocation0]]
  $region26: #{torch_model_forward.1} parent=0
    _
  %s6 = ssub.s32 1, %s4
  %s7 = scalar_select 0, %s6, %s4
  $region1: #{torch_model_forward.1} parent=0
    #allocation2 [shape = 'u8[8192]{0}', space=vmem, size = 0x2000, scoped, tag = 'input window, operand 1, single buffered']
    #allocation3 [shape = 's32[1]{0}', space=sflag, size = 0x4, scoped, tag = 'scoped memory for torch_model_forward.1']
    #allocation4 [shape = 's32[1]{0}', space=sflag, size = 0x4, scoped, tag = 'scoped memory for torch_model_forward.1']
    #allocation5 [shape = 'u8[4096]{0}', space=vmem, size = 0x1000, scoped, tag = 'output window, operand 0, single buffered']
    %8 = vsyncpa [#allocation3], 0
    %9 = vsyncpa [#allocation4], 0
    // Predicated region
    $region2: #{torch_model_forward.1} parent=1 // pred_check
      _
    $region3: #{torch_model_forward.1} parent=1 // pred_check_branch
      %11 = sbr.rel (0) target = $region5
    $region4: #{torch_model_forward.1} parent=1 // pred_region
      _
    $region5: #{torch_model_forward.1} parent=1 // pred_fallthru
      _
    // Predicated region
    $region6: #{torch_model_forward.1} parent=1 // pred_check
      _
    $region7: #{torch_model_forward.1} parent=1 // pred_check_branch
      %13 = sbr.rel (0) target = $region9
    $region8: #{torch_model_forward.1} parent=1 // pred_region
      %s15 = ssub.s32 256, 256
      %16 = vsyncadd [#allocation3], %s15
      %s17 = sshll.u32 [#allocation2], 4
      %s18 = int_to_ptr.vmem [resolvable:$true] %s17
      %23 = dma.hbm_to_vmem [thread:$0]  %s1, 256, %s18, [#allocation3], 64, 64, 4
    $region9: #{torch_model_forward.1} parent=1 // pred_fallthru
      _
    // Predicated region
    $region10: #{torch_model_forward.1} parent=1 // pred_check
      _
    $region11: #{torch_model_forward.1} parent=1 // pred_check_branch
      %25 = sbr.rel (0) target = $region13
    $region12: #{torch_model_forward.1} parent=1 // pred_region
      _
    $region13: #{torch_model_forward.1} parent=1 // pred_fallthru
      _
    // Predicated region
    $region14: #{torch_model_forward.1} parent=1 // pred_check
      _
    $region15: #{torch_model_forward.1} parent=1 // pred_check_branch
      %27 = sbr.rel (0) target = $region17
    $region16: #{torch_model_forward.1} parent=1 // pred_region
      %28 = dma.done [#allocation3], 256
    $region17: #{torch_model_forward.1} parent=1 // pred_fallthru
      _
    %v30 = vld [vmem:[%s0] sm:$0xf]
    %v31 = vld [vmem:[#allocation2] sm:$0xf]
    %v32 = vld [vmem:[#allocation2 + $0x4] sm:$0xf]
    %v33 = vld [vmem:[#allocation2 + $0x8] sm:$0xf]
    %v34 = vld [vmem:[#allocation2 + $0xc] sm:$0xf]
    %v35 = vld [vmem:[%s2] sm:$0x1]
    %v37 = vlaneseq
    %v38 = vshrl.u32 %v37, 7
    %v39 = vsub.s32 0, %v38
    %v40 = vrot.slane %v35, %v39
    %v46 = vunpack.c.l.b16 %v31
    %v47 = vunpack.c.l.b16 %v32
    %v48 = vunpack.c.l.b16 %v33
    %v49 = vunpack.c.l.b16 %v34
    %v50 = vpack.c.b16 %v47, %v46
    %v51 = vpack.c.b16 %v49, %v48
    %vm54 = vcmask 261120
    %v56 = vsel %vm54, %v30, 0
    %58 = vmatprep.subr.bf16.mxu0 0
    %59 = vmatpush1.bf16.msra.mxu0 %v50
    %60 = vmatprep.subr.bf16.mxu0 0
    %61 = vmatpush1.bf16.msra.mxu0 %v51
    %62 = vmatprep.subr.bf16.mxu0 0
    %63 = vmatpush1.bf16.msra.mxu0 0
    %64 = vmatprep.subr.bf16.mxu0 0
    %65 = vmatpush1.bf16.msra.mxu0 0
    %66 = vmatprep.subr.bf16.mxu0 0
    %67 = vmatpush1.bf16.msra.mxu0 0
    %68 = vmatprep.subr.bf16.mxu0 0
    %69 = vmatpush1.bf16.msra.mxu0 0
    %70 = vmatprep.subr.bf16.mxu0 0
    %71 = vmatpush1.bf16.msra.mxu0 0
    %72 = vmatprep.subr.bf16.mxu0 0
    %73 = vmatpush1.bf16.msra.mxu0 0
    %74 = vmatprep.subr.bf16.mxu0 0
    %75 = vmatpush1.bf16.msra.mxu0 0
    %76 = vmatprep.subr.bf16.mxu0 0
    %77 = vmatpush1.bf16.msra.mxu0 0
    %78 = vmatprep.subr.bf16.mxu0 0
    %79 = vmatpush1.bf16.msra.mxu0 0
    %80 = vmatprep.subr.bf16.mxu0 0
    %81 = vmatpush1.bf16.msra.mxu0 0
    %82 = vmatprep.subr.bf16.mxu0 0
    %83 = vmatpush1.bf16.msra.mxu0 0
    %84 = vmatprep.subr.bf16.mxu0 0
    %85 = vmatpush1.bf16.msra.mxu0 0
    %86 = vmatprep.subr.bf16.mxu0 0
    %87 = vmatpush1.bf16.msra.mxu0 0
    %88 = vmatprep.subr.bf16.mxu0 0
    %89 = vmatpush1.bf16.msra.mxu0 0
    %90 = vmatprep.mubr.bf16.mxu0 0
    %91 = vmatmul.mubr.bf16.gmra.mrb[0].mxu0 %v56
    %v92 = vpop.f32.mrb[0].mxu0
    %v93 = vadd.f32 %v40, %v92
    %v94 = vpop.f32.mrb[0].mxu0
    %v95 = vpop.f32.mrb[0].mxu0
    %v96 = vpop.f32.mrb[0].mxu0
    %97 = vdwg.mxu0
    %98 = vmax.xlane.f32.xlu0 %v93
    %v99 = vpop.xlane.xlu0 %98
    %v100 = vsub.f32 %v93, %v99
    %v101 = vmul.f32 %v100, 1.442695
    %v102 = vpow.pop %v101
    %103 = vadd.xlane.f32.xlu0 %v102
    %v104 = vpop.xlane.xlu0 %103
    %v105 = vrcp.pop %v104
    %v106 = vmul.f32 %v102, %v105
    %107 = vst [vmem:[#allocation5] sm:$0xff] %v106
    // Predicated region
    $region18: #{torch_model_forward.1} parent=1 // pred_check
      _
    $region19: #{torch_model_forward.1} parent=1 // pred_check_branch
      %109 = sbr.rel (0) target = $region21
    $region20: #{torch_model_forward.1} parent=1 // pred_region
      %s111 = ssub.s32 128, 128
      %112 = vsyncadd [#allocation4], %s111
      %s114 = sshll.u32 [#allocation5], 4
      %s115 = int_to_ptr.vmem [resolvable:$true] %s114
      %117 = dma.vmem_to_hbm [thread:$0]  %s115, 128, %s3, [#allocation4]
    $region21: #{torch_model_forward.1} parent=1 // pred_fallthru
      _
    // Predicated region
    $region22: #{torch_model_forward.1} parent=1 // pred_check
      _
    $region23: #{torch_model_forward.1} parent=1 // pred_check_branch
      %119 = sbr.rel (0) target = $region25
    $region24: #{torch_model_forward.1} parent=1 // pred_region
      %120 = dma.done [#allocation4], 128
    $region25: #{torch_model_forward.1} parent=1 // pred_fallthru
      _
    %121 = vsyncpa [#allocation3], 1
    %122 = vsyncpa [#allocation4], 1

</llo_original>
